<compile_context>
chip_gen: v5e
topology: v5e:2x2
jax: 0.10.0
libtpu: 0.0.40
codegen_flags: <defaults>
</compile_context>

<pallas_src>
import functools

import jax
import jax.numpy as jnp
from jax import lax
from jax.experimental import pallas as pl
from jax.experimental.pallas import tpu as pltpu


# ----------------------------- Pallas kernel ------------------------------- #
def _attention_kernel(q_ref, k_ref, v_ref,
                      wq_ref, bq_ref, wk_ref, bk_ref, wv_ref, bv_ref,
                      wo_ref, bo_ref, o_ref, ctx_ref, *, heads, d, fuse_proj):
    f32, bf16 = jnp.float32, jnp.bfloat16
    D = heads * d
    Bt, tq, _ = q_ref.shape
    Sk = k_ref.shape[1]
    Sv = v_ref.shape[1]

    # Activations -> bf16 for MXU-native matmuls; accumulate in f32.
    q = q_ref[...].astype(bf16).reshape(Bt * tq, D)
    k = k_ref[...].astype(bf16).reshape(Bt * Sk, D)
    v = v_ref[...].astype(bf16).reshape(Bt * Sv, D)

    def project(x, w_ref, b_ref):
        if fuse_proj:
            # Block-diagonal (D, D) weight: one fused matmul covers all heads.
            return jnp.dot(x, w_ref[...], preferred_element_type=f32) + b_ref[...]
        # D > 128: shared (d, d) per-head weight applied to (rows*heads, d)
        # (avoids multiplying against zero blocks of a kron weight).
        n = x.shape[0]
        y = jnp.dot(x.reshape(n * heads, d), w_ref[...],
                    preferred_element_type=f32) + b_ref[...]
        return y.reshape(n, D)

    # 2/d score scale is pre-folded into wq/bq on the host.
    qp = project(q, wq_ref, bq_ref).astype(bf16).reshape(Bt, tq, D)
    kp = project(k, wk_ref, bk_ref).astype(bf16).reshape(Bt, Sk, D)
    vp = project(v, wv_ref, bv_ref).astype(bf16).reshape(Bt, Sv, D)

    # Per-head attention (heads is static -> unrolled).  NOTE: the attention
    # mask is intentionally NOT applied — the PyTorch module discards the
    # masked_fill result.
    # TODO(synk): for large heads*S, replace the unroll with a head-batched
    #   dot_general or a head grid axis to bound vreg live ranges.
    for h in range(heads):
        sl = slice(h * d, (h + 1) * d)
        qh, kh, vh = qp[:, :, sl], kp[:, :, sl], vp[:, :, sl]

        s = lax.dot_general(qh, kh, (((2,), (2,)), ((0,), (0,))),
                            preferred_element_type=f32)          # (Bt, tq, Sk)
        s = s - jnp.max(s, axis=-1, keepdims=True)
        p = jnp.exp(s)
        inv = pl.reciprocal(jnp.sum(p, axis=-1, keepdims=True), approx=False)

        ctx = lax.dot_general(p.astype(bf16), vh, (((2,), (1,)), ((0,), (0,))),
                              preferred_element_type=f32)        # (Bt, tq, d)
        # "Concat over heads": place this head's context at lane offset h*d.
        ctx_ref[:, sl] = (ctx * inv).reshape(Bt * tq, d).astype(bf16)

    # Single output projection over the full concatenated context.
    out = jnp.dot(ctx_ref[...], wo_ref[...], preferred_element_type=f32) + bo_ref[...]
    o_ref[...] = out.reshape(Bt, tq, D).astype(o_ref.dtype)


# --------------------------- host-side helpers ------------------------------ #
def _tensorcores_per_chip():
    # v7x has 2 TensorCores per chip; v5e/v6e have 1.
    try:
        kind = jax.devices()[0].device_kind.lower()
    except Exception:
        return 1
    return 2 if "v7" in kind else 1


def _prep_weights(params, heads, D, w_dtype=jnp.bfloat16):
    """Pre-transpose weights (bf16), fold the 2/d scale into the Q projection,
    and build block-diagonal projection weights only while D <= 128."""
    d = D // heads
    wq, bq, wk, bk, wv, bv, wo, bo = params
    scale = 2.0 / d                      # PyTorch: score / (d ** 1 / 2) == score * 2/d
    fuse = D <= 128
    if fuse:
        eye = jnp.eye(heads, dtype=jnp.float32)
        wq_t = jnp.kron(eye, (wq * scale).T).astype(w_dtype)       # (D, D)
        wk_t = jnp.kron(eye, wk.T).astype(w_dtype)
        wv_t = jnp.kron(eye, wv.T).astype(w_dtype)
        bq_t = jnp.tile(bq.reshape(1, d) * scale, (1, heads)).astype(jnp.float32)
        bk_t = jnp.tile(bk.reshape(1, d), (1, heads)).astype(jnp.float32)
        bv_t = jnp.tile(bv.reshape(1, d), (1, heads)).astype(jnp.float32)
    else:
        wq_t = ((wq * scale).T).astype(w_dtype)                    # (d, d)
        wk_t = wk.T.astype(w_dtype)
        wv_t = wv.T.astype(w_dtype)
        bq_t = (bq.reshape(1, d) * scale).astype(jnp.float32)
        bk_t = bk.reshape(1, d).astype(jnp.float32)
        bv_t = bv.reshape(1, d).astype(jnp.float32)
    wo_t = wo.T.astype(w_dtype)                                    # (D, D)
    bo_t = bo.reshape(1, D).astype(jnp.float32)
    return (wq_t, bq_t, wk_t, bk_t, wv_t, bv_t, wo_t, bo_t), fuse


def _pick_blocks(B, Sq, D, n_tc):
    """Choose (batch_blocks, q_blocks) for the 2-D parallel grid.

    Enough grid steps to keep every TensorCore busy (v7x) and give the
    BlockSpec pipeline >= 2 steps (v5e DMA/compute overlap), scaling with the
    data size so large problems get more (VMEM-bounded) steps.  Blocks never
    shrink the lane dim (D stays whole) and keep the query-row dim a multiple
    of 8 (or full).  Batch is split first (identical K/V work per step);
    queries only if batch alone cannot supply enough steps (e.g. odd batch).
    """
    bytes_total = 4 * B * Sq * D
    min_steps = max(2, n_tc, pl.cdiv(bytes_total, 2 << 20))
    bb = 1
    for cand in range(min(B, min_steps), 0, -1):
        if B % cand == 0:
            bb = cand
            break
    qb = 1
    if bb < min_steps:
        want = pl.cdiv(min_steps, bb)
        for cand in range(1, min(Sq, want) + 1):
            if Sq % cand:
                continue
            tq = Sq // cand
            if cand == 1 or tq % 8 == 0:
                qb = cand
    return bb, qb


# ------------------------------ host wrapper -------------------------------- #
def attention_forward(query, key, value, mask, params, heads):
    """Pallas-backed forward pass. `mask` is accepted but (faithfully) unused."""
    del mask  # masked_fill result is discarded in the PyTorch module -> no-op
    B, Sq, D = query.shape
    Sk, Sv = key.shape[1], value.shape[1]
    assert D % heads == 0
    d = D // heads

    (wq_t, bq_t, wk_t, bk_t, wv_t, bv_t, wo_t, bo_t), fuse = _prep_weights(params, heads, D)

    n_tc = _tensorcores_per_chip()
    bb, qb = _pick_blocks(B, Sq, D, n_tc)
    Bt, tq = B // bb, Sq // qb

    # VMEM budget (v7x has only 64 MiB physical / 32 MiB default scoped VMEM).
    io = 2 * 4 * (2 * Bt * tq * D + Bt * Sk * D + Bt * Sv * D)          # dbl-buffered blocks
    tmp = 4 * (Bt * (tq + Sk + Sv) * D * 3 + heads * Bt * tq * Sk * 3 + Bt * tq * D)
    wts = 2 * (wq_t.size + wk_t.size + wv_t.size + wo_t.size) \
        + 4 * (bq_t.size + bk_t.size + bv_t.size + bo_t.size)
    vmem_need = int(io + tmp + wts) + (4 << 20)
    vmem_limit = min(vmem_need, 96 << 20) if vmem_need > (32 << 20) else None

    kernel = functools.partial(_attention_kernel, heads=heads, d=d, fuse_proj=fuse)

    def full_spec(arr):
        return pl.BlockSpec(arr.shape, lambda b, i, _nd=arr.ndim: (0,) * _nd)

    out = pl.pallas_call(
        kernel,
        out_shape=jax.ShapeDtypeStruct((B, Sq, D), query.dtype),
        grid=(bb, qb),
        in_specs=[
            pl.BlockSpec((Bt, tq, D), lambda b, i: (b, i, 0)),   # query block
            pl.BlockSpec((Bt, Sk, D), lambda b, i: (b, 0, 0)),   # full keys for this batch block
            pl.BlockSpec((Bt, Sv, D), lambda b, i: (b, 0, 0)),   # full values
            full_spec(wq_t), full_spec(bq_t),
            full_spec(wk_t), full_spec(bk_t),
            full_spec(wv_t), full_spec(bv_t),
            full_spec(wo_t), full_spec(bo_t),
        ],
        out_specs=pl.BlockSpec((Bt, tq, D), lambda b, i: (b, i, 0)),
        scratch_shapes=[pltpu.VMEM((Bt * tq, D), jnp.bfloat16)],  # concat-heads slab
        compiler_params=pltpu.CompilerParams(
            dimension_semantics=("parallel", "parallel"),
            vmem_limit_bytes=vmem_limit),
    )(query, key, value, wq_t, bq_t, wk_t, bk_t, wv_t, bv_t, wo_t, bo_t)
    return out


# --------------------------- pure-JAX references ---------------------------- #
def attention_ref(query, key, value, mask, params, heads):
    """f32 reference with the exact (buggy) PyTorch semantics."""
    del mask  # masked_fill result is discarded in the PyTorch module
    B, Sq, D = query.shape
    d = D // heads
    wq, bq, wk, bk, wv, bv, wo, bo = params
    q = query.reshape(B, Sq, heads, d) @ wq.T + bq.reshape(d)
    k = key.reshape(B, key.shape[1], heads, d) @ wk.T + bk.reshape(d)
    v = value.reshape(B, value.shape[1], heads, d) @ wv.T + bv.reshape(d)
    score = jnp.einsum('bqhd,bkhd->bhqk', q, k)
    score = jax.nn.softmax(score / (d ** 1 / 2), axis=-1)   # == score * 2/d (as in PyTorch)
    out = jnp.einsum('bhqk,bkhd->bqhd', score, v).reshape(B, Sq, heads * d)
    return out @ wo.T + bo.reshape(D)


def attention_ref_mirror(query, key, value, params, heads):
    """JAX reference mirroring the kernel's bf16-operand / f32-accum math."""
    B, Sq, D = query.shape
    Sk, Sv = key.shape[1], value.shape[1]
    d = D // heads
    (wq_t, bq_t, wk_t, bk_t, wv_t, bv_t, wo_t, bo_t), fuse = _prep_weights(params, heads, D)
    bf16, f32 = jnp.bfloat16, jnp.float32

    def proj(x, w, b):
        x2 = x.reshape(-1, D).astype(bf16)
        if fuse:
            return jnp.dot(x2, w, preferred_element_type=f32) + b
        y = jnp.dot(x2.reshape(-1, d), w, preferred_element_type=f32) + b
        return y.reshape(-1, D)

    qp = proj(query, wq_t, bq_t).astype(bf16).reshape(B, Sq, heads, d)
    kp = proj(key, wk_t, bk_t).astype(bf16).reshape(B, Sk, heads, d)
    vp = proj(value, wv_t, bv_t).astype(bf16).reshape(B, Sv, heads, d)

    s = jnp.einsum('bqhd,bkhd->bhqk', qp, kp, preferred_element_type=f32)
    s = s - s.max(-1, keepdims=True)
    p = jnp.exp(s)
    inv = 1.0 / p.sum(-1, keepdims=True)                       # (B, heads, Sq, 1)
    ctx = jnp.einsum('bhqk,bkhd->bqhd', p.astype(bf16), vp, preferred_element_type=f32)
    ctx = ctx * jnp.moveaxis(inv, 1, 2)                        # (B, Sq, heads, 1)
    out = jnp.dot(ctx.reshape(B * Sq, D).astype(bf16), wo_t,
                  preferred_element_type=f32) + bo_t
    return out.reshape(B, Sq, D).astype(query.dtype)


# ----------------------------------- main ----------------------------------- #
if __name__ == "__main__":
    # Small shapes consistent with the module: batch=2, seq=8, heads=2, D=32.
    B, S, HEADS, D = 2, 8, 2, 32
    d = D // HEADS

    key0 = jax.random.PRNGKey(0)
    ks = jax.random.split(key0, 12)

    def uinit(k, shape, fan_in):
        bound = 1.0 / (fan_in ** 0.5)
        return jax.random.uniform(k, shape, jnp.float32, -bound, bound)

    # nn.Linear-style deterministic init (weight (out, in), bias stored (1, out)).
    wq, bq = uinit(ks[0], (d, d), d), uinit(ks[1], (1, d), d)
    wk, bk = uinit(ks[2], (d, d), d), uinit(ks[3], (1, d), d)
    wv, bv = uinit(ks[4], (d, d), d), uinit(ks[5], (1, d), d)
    wo, bo = uinit(ks[6], (D, HEADS * d), HEADS * d), uinit(ks[7], (1, D), HEADS * d)
    params = (wq, bq, wk, bk, wv, bv, wo, bo)

    query = jax.random.normal(ks[8], (B, S, D), jnp.float32)
    keyx = jax.random.normal(ks[9], (B, S, D), jnp.float32)
    value = jax.random.normal(ks[10], (B, S, D), jnp.float32)
    mask = (jax.random.uniform(ks[11], (B, 1, S, S)) > 0.2).astype(jnp.int32)

    out = attention_forward(query, keyx, value, mask, params, HEADS)
    out = jax.block_until_ready(out)
    assert out.shape == (B, S, D)

    # Tight check vs a JAX reference that mirrors the kernel's bf16 MXU
    # operands / f32 accumulation.
    ref_bits = attention_ref_mirror(query, keyx, value, params, HEADS)
    assert jnp.allclose(out, ref_bits, atol=1e-3, rtol=1e-3), "mismatch vs mirrored reference"

    # Loose check vs the pure-f32 module semantics (delta = bf16 operand rounding).
    ref_f32 = attention_ref(query, keyx, value, mask, params, HEADS)
    assert jnp.allclose(out, ref_f32, atol=2e-2, rtol=2e-2), "mismatch vs f32 reference"

    print("KERNEL_OK")
</pallas_src>

<mosaic_0001>
module attributes {stable_mosaic.version = 11 : i64} {
  func.func @_attention_kernel(%arg0: i32, %arg1: i32, %arg2: memref<1x8x32xf32, #tpu.memory_space<vmem>>, %arg3: memref<1x8x32xf32, #tpu.memory_space<vmem>>, %arg4: memref<1x8x32xf32, #tpu.memory_space<vmem>>, %arg5: memref<32x32xbf16, #tpu.memory_space<vmem>>, %arg6: memref<1x32xf32, #tpu.memory_space<vmem>>, %arg7: memref<32x32xbf16, #tpu.memory_space<vmem>>, %arg8: memref<1x32xf32, #tpu.memory_space<vmem>>, %arg9: memref<32x32xbf16, #tpu.memory_space<vmem>>, %arg10: memref<1x32xf32, #tpu.memory_space<vmem>>, %arg11: memref<32x32xbf16, #tpu.memory_space<vmem>>, %arg12: memref<1x32xf32, #tpu.memory_space<vmem>>, %arg13: memref<1x8x32xf32, #tpu.memory_space<vmem>>, %arg14: memref<8x32xbf16, #tpu.memory_space<vmem>>) attributes {dimension_semantics = [#tpu.dimension_semantics<parallel>, #tpu.dimension_semantics<parallel>], iteration_bounds = array<i64: 2, 1>, scalar_prefetch = 0 : i64, scratch_operands = 1 : i64, tpu.core_type = #tpu.core_type<tc>, window_params = [{transform_indices = @transform_0, window_bounds = array<i64: 1, 8, 32>}, {transform_indices = @transform_1, window_bounds = array<i64: 1, 8, 32>}, {transform_indices = @transform_2, window_bounds = array<i64: 1, 8, 32>}, {pipeline_mode = #tpu.pipeline_mode<synchronous>, transform_indices = @transform_3, window_bounds = array<i64: 32, 32>}, {pipeline_mode = #tpu.pipeline_mode<synchronous>, transform_indices = @transform_4, window_bounds = array<i64: 1, 32>}, {pipeline_mode = #tpu.pipeline_mode<synchronous>, transform_indices = @transform_5, window_bounds = array<i64: 32, 32>}, {pipeline_mode = #tpu.pipeline_mode<synchronous>, transform_indices = @transform_6, window_bounds = array<i64: 1, 32>}, {pipeline_mode = #tpu.pipeline_mode<synchronous>, transform_indices = @transform_7, window_bounds = array<i64: 32, 32>}, {pipeline_mode = #tpu.pipeline_mode<synchronous>, transform_indices = @transform_8, window_bounds = array<i64: 1, 32>}, {pipeline_mode = #tpu.pipeline_mode<synchronous>, transform_indices = @transform_9, window_bounds = array<i64: 32, 32>}, {pipeline_mode = #tpu.pipeline_mode<synchronous>, transform_indices = @transform_10, window_bounds = array<i64: 1, 32>}, {transform_indices = @transform_11, window_bounds = array<i64: 1, 8, 32>}]} {
    %c0 = arith.constant 0 : index
    %c0_0 = arith.constant 0 : index
    %c0_1 = arith.constant 0 : index
    %0 = vector.load %arg2[%c0, %c0_0, %c0_1] : memref<1x8x32xf32, #tpu.memory_space<vmem>>, vector<1x8x32xf32>
    %1 = arith.truncf %0 : vector<1x8x32xf32> to vector<1x8x32xbf16>
    %2 = vector.shape_cast %1 : vector<1x8x32xbf16> to vector<8x32xbf16>
    %c0_2 = arith.constant 0 : index
    %c0_3 = arith.constant 0 : index
    %c0_4 = arith.constant 0 : index
    %3 = vector.load %arg3[%c0_2, %c0_3, %c0_4] : memref<1x8x32xf32, #tpu.memory_space<vmem>>, vector<1x8x32xf32>
    %4 = arith.truncf %3 : vector<1x8x32xf32> to vector<1x8x32xbf16>
    %5 = vector.shape_cast %4 : vector<1x8x32xbf16> to vector<8x32xbf16>
    %c0_5 = arith.constant 0 : index
    %c0_6 = arith.constant 0 : index
    %c0_7 = arith.constant 0 : index
    %6 = vector.load %arg4[%c0_5, %c0_6, %c0_7] : memref<1x8x32xf32, #tpu.memory_space<vmem>>, vector<1x8x32xf32>
    %7 = arith.truncf %6 : vector<1x8x32xf32> to vector<1x8x32xbf16>
    %8 = vector.shape_cast %7 : vector<1x8x32xbf16> to vector<8x32xbf16>
    %c0_8 = arith.constant 0 : index
    %c0_9 = arith.constant 0 : index
    %9 = vector.load %arg5[%c0_8, %c0_9] : memref<32x32xbf16, #tpu.memory_space<vmem>>, vector<32x32xbf16>
    %cst = arith.constant dense<0.000000e+00> : vector<8x32xf32>
    %10 = tpu.matmul %2, %9, %cst {dimension_numbers = #tpu.dot_dimension_numbers<[1], [0], [0], [1], [0, 0, 1, 1], [], []>} : vector<8x32xbf16>, vector<32x32xbf16>, vector<8x32xf32> -> vector<8x32xf32>
    %c0_10 = arith.constant 0 : index
    %c0_11 = arith.constant 0 : index
    %11 = vector.load %arg6[%c0_10, %c0_11] : memref<1x32xf32, #tpu.memory_space<vmem>>, vector<1x32xf32>
    %12 = vector.broadcast %11 : vector<1x32xf32> to vector<8x32xf32>
    %13 = arith.addf %10, %12 : vector<8x32xf32>
    %14 = arith.truncf %13 : vector<8x32xf32> to vector<8x32xbf16>
    %15 = vector.shape_cast %14 : vector<8x32xbf16> to vector<1x8x32xbf16>
    %c0_12 = arith.constant 0 : index
    %c0_13 = arith.constant 0 : index
    %16 = vector.load %arg7[%c0_12, %c0_13] : memref<32x32xbf16, #tpu.memory_space<vmem>>, vector<32x32xbf16>
    %cst_14 = arith.constant dense<0.000000e+00> : vector<8x32xf32>
    %17 = tpu.matmul %5, %16, %cst_14 {dimension_numbers = #tpu.dot_dimension_numbers<[1], [0], [0], [1], [0, 0, 1, 1], [], []>} : vector<8x32xbf16>, vector<32x32xbf16>, vector<8x32xf32> -> vector<8x32xf32>
    %c0_15 = arith.constant 0 : index
    %c0_16 = arith.constant 0 : index
    %18 = vector.load %arg8[%c0_15, %c0_16] : memref<1x32xf32, #tpu.memory_space<vmem>>, vector<1x32xf32>
    %19 = vector.broadcast %18 : vector<1x32xf32> to vector<8x32xf32>
    %20 = arith.addf %17, %19 : vector<8x32xf32>
    %21 = arith.truncf %20 : vector<8x32xf32> to vector<8x32xbf16>
    %22 = vector.shape_cast %21 : vector<8x32xbf16> to vector<1x8x32xbf16>
    %c0_17 = arith.constant 0 : index
    %c0_18 = arith.constant 0 : index
    %23 = vector.load %arg9[%c0_17, %c0_18] : memref<32x32xbf16, #tpu.memory_space<vmem>>, vector<32x32xbf16>
    %cst_19 = arith.constant dense<0.000000e+00> : vector<8x32xf32>
    %24 = tpu.matmul %8, %23, %cst_19 {dimension_numbers = #tpu.dot_dimension_numbers<[1], [0], [0], [1], [0, 0, 1, 1], [], []>} : vector<8x32xbf16>, vector<32x32xbf16>, vector<8x32xf32> -> vector<8x32xf32>
    %c0_20 = arith.constant 0 : index
    %c0_21 = arith.constant 0 : index
    %25 = vector.load %arg10[%c0_20, %c0_21] : memref<1x32xf32, #tpu.memory_space<vmem>>, vector<1x32xf32>
    %26 = vector.broadcast %25 : vector<1x32xf32> to vector<8x32xf32>
    %27 = arith.addf %24, %26 : vector<8x32xf32>
    %28 = arith.truncf %27 : vector<8x32xf32> to vector<8x32xbf16>
    %29 = vector.shape_cast %28 : vector<8x32xbf16> to vector<1x8x32xbf16>
    %30 = vector.extract_strided_slice %15 {offsets = [0, 0, 0], sizes = [1, 8, 16], strides = [1, 1, 1]} : vector<1x8x32xbf16> to vector<1x8x16xbf16>
    %31 = vector.extract_strided_slice %22 {offsets = [0, 0, 0], sizes = [1, 8, 16], strides = [1, 1, 1]} : vector<1x8x32xbf16> to vector<1x8x16xbf16>
    %32 = vector.extract_strided_slice %29 {offsets = [0, 0, 0], sizes = [1, 8, 16], strides = [1, 1, 1]} : vector<1x8x32xbf16> to vector<1x8x16xbf16>
    %cst_22 = arith.constant dense<0.000000e+00> : vector<1x8x8xf32>
    %33 = tpu.matmul %30, %31, %cst_22 {dimension_numbers = #tpu.dot_dimension_numbers<[2], [2], [1], [1], [0, 0, 0, 1, 1, 1], [0], [0]>} : vector<1x8x16xbf16>, vector<1x8x16xbf16>, vector<1x8x8xf32> -> vector<1x8x8xf32>
    %cst_23 = arith.constant dense<0xFF800000> : vector<1x8xf32>
    %34 = vector.multi_reduction <maximumf>, %33, %cst_23 [2] : vector<1x8x8xf32> to vector<1x8xf32>
    %35 = vector.shape_cast %34 : vector<1x8xf32> to vector<1x8x1xf32>
    %36 = vector.broadcast %35 : vector<1x8x1xf32> to vector<1x8x8xf32>
    %37 = arith.subf %33, %36 : vector<1x8x8xf32>
    %38 = math.exp %37 : vector<1x8x8xf32>
    %cst_24 = arith.constant dense<0.000000e+00> : vector<1x8xf32>
    %39 = vector.multi_reduction <add>, %38, %cst_24 [2] : vector<1x8x8xf32> to vector<1x8xf32>
    %40 = vector.shape_cast %39 : vector<1x8xf32> to vector<1x8x1xf32>
    %41 = tpu.reciprocal %40 : vector<1x8x1xf32> -> vector<1x8x1xf32>
    %42 = arith.truncf %38 : vector<1x8x8xf32> to vector<1x8x8xbf16>
    %cst_25 = arith.constant dense<0.000000e+00> : vector<1x8x16xf32>
    %43 = tpu.matmul %42, %32, %cst_25 {dimension_numbers = #tpu.dot_dimension_numbers<[2], [1], [1], [2], [0, 0, 0, 1, 1, 2], [0], [0]>} : vector<1x8x8xbf16>, vector<1x8x16xbf16>, vector<1x8x16xf32> -> vector<1x8x16xf32>
    %44 = vector.broadcast %41 : vector<1x8x1xf32> to vector<1x8x16xf32>
    %45 = arith.mulf %43, %44 : vector<1x8x16xf32>
    %46 = vector.shape_cast %45 : vector<1x8x16xf32> to vector<8x16xf32>
    %47 = arith.truncf %46 : vector<8x16xf32> to vector<8x16xbf16>
    %c0_26 = arith.constant 0 : index
    %c0_27 = arith.constant 0 : index
    %48 = vector.load %arg14[%c0_26, %c0_27] : memref<8x32xbf16, #tpu.memory_space<vmem>>, vector<8x16xbf16>
    tpu.vector_store %arg14[%c0_26, %c0_27], %47 {strides = array<i32>} : memref<8x32xbf16, #tpu.memory_space<vmem>>, vector<8x16xbf16>,
    %49 = vector.extract_strided_slice %15 {offsets = [0, 0, 16], sizes = [1, 8, 16], strides = [1, 1, 1]} : vector<1x8x32xbf16> to vector<1x8x16xbf16>
    %50 = vector.extract_strided_slice %22 {offsets = [0, 0, 16], sizes = [1, 8, 16], strides = [1, 1, 1]} : vector<1x8x32xbf16> to vector<1x8x16xbf16>
    %51 = vector.extract_strided_slice %29 {offsets = [0, 0, 16], sizes = [1, 8, 16], strides = [1, 1, 1]} : vector<1x8x32xbf16> to vector<1x8x16xbf16>
    %cst_28 = arith.constant dense<0.000000e+00> : vector<1x8x8xf32>
    %52 = tpu.matmul %49, %50, %cst_28 {dimension_numbers = #tpu.dot_dimension_numbers<[2], [2], [1], [1], [0, 0, 0, 1, 1, 1], [0], [0]>} : vector<1x8x16xbf16>, vector<1x8x16xbf16>, vector<1x8x8xf32> -> vector<1x8x8xf32>
    %cst_29 = arith.constant dense<0xFF800000> : vector<1x8xf32>
    %53 = vector.multi_reduction <maximumf>, %52, %cst_29 [2] : vector<1x8x8xf32> to vector<1x8xf32>
    %54 = vector.shape_cast %53 : vector<1x8xf32> to vector<1x8x1xf32>
    %55 = vector.broadcast %54 : vector<1x8x1xf32> to vector<1x8x8xf32>
    %56 = arith.subf %52, %55 : vector<1x8x8xf32>
    %57 = math.exp %56 : vector<1x8x8xf32>
    %cst_30 = arith.constant dense<0.000000e+00> : vector<1x8xf32>
    %58 = vector.multi_reduction <add>, %57, %cst_30 [2] : vector<1x8x8xf32> to vector<1x8xf32>
    %59 = vector.shape_cast %58 : vector<1x8xf32> to vector<1x8x1xf32>
    %60 = tpu.reciprocal %59 : vector<1x8x1xf32> -> vector<1x8x1xf32>
    %61 = arith.truncf %57 : vector<1x8x8xf32> to vector<1x8x8xbf16>
    %cst_31 = arith.constant dense<0.000000e+00> : vector<1x8x16xf32>
    %62 = tpu.matmul %61, %51, %cst_31 {dimension_numbers = #tpu.dot_dimension_numbers<[2], [1], [1], [2], [0, 0, 0, 1, 1, 2], [0], [0]>} : vector<1x8x8xbf16>, vector<1x8x16xbf16>, vector<1x8x16xf32> -> vector<1x8x16xf32>
    %63 = vector.broadcast %60 : vector<1x8x1xf32> to vector<1x8x16xf32>
    %64 = arith.mulf %62, %63 : vector<1x8x16xf32>
    %65 = vector.shape_cast %64 : vector<1x8x16xf32> to vector<8x16xf32>
    %66 = arith.truncf %65 : vector<8x16xf32> to vector<8x16xbf16>
    %c0_32 = arith.constant 0 : index
    %c16 = arith.constant 16 : index
    %67 = vector.load %arg14[%c0_32, %c16] : memref<8x32xbf16, #tpu.memory_space<vmem>>, vector<8x16xbf16>
    tpu.vector_store %arg14[%c0_32, %c16], %66 {strides = array<i32>} : memref<8x32xbf16, #tpu.memory_space<vmem>>, vector<8x16xbf16>,
    %c0_33 = arith.constant 0 : index
    %c0_34 = arith.constant 0 : index
    %68 = vector.load %arg14[%c0_33, %c0_34] : memref<8x32xbf16, #tpu.memory_space<vmem>>, vector<8x32xbf16>
    %c0_35 = arith.constant 0 : index
    %c0_36 = arith.constant 0 : index
    %69 = vector.load %arg11[%c0_35, %c0_36] : memref<32x32xbf16, #tpu.memory_space<vmem>>, vector<32x32xbf16>
    %cst_37 = arith.constant dense<0.000000e+00> : vector<8x32xf32>
    %70 = tpu.matmul %68, %69, %cst_37 {dimension_numbers = #tpu.dot_dimension_numbers<[1], [0], [0], [1], [0, 0, 1, 1], [], []>} : vector<8x32xbf16>, vector<32x32xbf16>, vector<8x32xf32> -> vector<8x32xf32>
    %c0_38 = arith.constant 0 : index
    %c0_39 = arith.constant 0 : index
    %71 = vector.load %arg12[%c0_38, %c0_39] : memref<1x32xf32, #tpu.memory_space<vmem>>, vector<1x32xf32>
    %72 = vector.broadcast %71 : vector<1x32xf32> to vector<8x32xf32>
    %73 = arith.addf %70, %72 : vector<8x32xf32>
    %74 = vector.shape_cast %73 : vector<8x32xf32> to vector<1x8x32xf32>
    %c0_40 = arith.constant 0 : index
    %c0_41 = arith.constant 0 : index
    %c0_42 = arith.constant 0 : index
    %75 = vector.load %arg13[%c0_40, %c0_41, %c0_42] : memref<1x8x32xf32, #tpu.memory_space<vmem>>, vector<1x8x32xf32>
    tpu.vector_store %arg13[%c0_40, %c0_41, %c0_42], %74 {strides = array<i32>} : memref<1x8x32xf32, #tpu.memory_space<vmem>>, vector<1x8x32xf32>,
    return
  }
  func.func @transform_0(%arg0: i32, %arg1: i32) -> (i32, i32, i32) {
    %c0_i32 = arith.constant 0 : i32
    %c0_i32_0 = arith.constant 0 : i32
    return %arg0, %arg1, %c0_i32 : i32, i32, i32
  }
  func.func @transform_1(%arg0: i32, %arg1: i32) -> (i32, i32, i32) {
    %c0_i32 = arith.constant 0 : i32
    %c0_i32_0 = arith.constant 0 : i32
    %c0_i32_1 = arith.constant 0 : i32
    return %arg0, %c0_i32, %c0_i32_0 : i32, i32, i32
  }
  func.func @transform_2(%arg0: i32, %arg1: i32) -> (i32, i32, i32) {
    %c0_i32 = arith.constant 0 : i32
    %c0_i32_0 = arith.constant 0 : i32
    %c0_i32_1 = arith.constant 0 : i32
    return %arg0, %c0_i32, %c0_i32_0 : i32, i32, i32
  }
  func.func @transform_3(%arg0: i32, %arg1: i32) -> (i32, i32) {
    %c0_i32 = arith.constant 0 : i32
    %c0_i32_0 = arith.constant 0 : i32
    %c0_i32_1 = arith.constant 0 : i32
    return %c0_i32, %c0_i32_0 : i32, i32
  }
  func.func @transform_4(%arg0: i32, %arg1: i32) -> (i32, i32) {
    %c0_i32 = arith.constant 0 : i32
    %c0_i32_0 = arith.constant 0 : i32
    %c0_i32_1 = arith.constant 0 : i32
    return %c0_i32, %c0_i32_0 : i32, i32
  }
  func.func @transform_5(%arg0: i32, %arg1: i32) -> (i32, i32) {
    %c0_i32 = arith.constant 0 : i32
    %c0_i32_0 = arith.constant 0 : i32
    %c0_i32_1 = arith.constant 0 : i32
    return %c0_i32, %c0_i32_0 : i32, i32
  }
  func.func @transform_6(%arg0: i32, %arg1: i32) -> (i32, i32) {
    %c0_i32 = arith.constant 0 : i32
    %c0_i32_0 = arith.constant 0 : i32
    %c0_i32_1 = arith.constant 0 : i32
    return %c0_i32, %c0_i32_0 : i32, i32
  }
  func.func @transform_7(%arg0: i32, %arg1: i32) -> (i32, i32) {
    %c0_i32 = arith.constant 0 : i32
    %c0_i32_0 = arith.constant 0 : i32
    %c0_i32_1 = arith.constant 0 : i32
    return %c0_i32, %c0_i32_0 : i32, i32
  }
  func.func @transform_8(%arg0: i32, %arg1: i32) -> (i32, i32) {
    %c0_i32 = arith.constant 0 : i32
    %c0_i32_0 = arith.constant 0 : i32
    %c0_i32_1 = arith.constant 0 : i32
    return %c0_i32, %c0_i32_0 : i32, i32
  }
  func.func @transform_9(%arg0: i32, %arg1: i32) -> (i32, i32) {
    %c0_i32 = arith.constant 0 : i32
    %c0_i32_0 = arith.constant 0 : i32
    %c0_i32_1 = arith.constant 0 : i32
    return %c0_i32, %c0_i32_0 : i32, i32
  }
  func.func @transform_10(%arg0: i32, %arg1: i32) -> (i32, i32) {
    %c0_i32 = arith.constant 0 : i32
    %c0_i32_0 = arith.constant 0 : i32
    %c0_i32_1 = arith.constant 0 : i32
    return %c0_i32, %c0_i32_0 : i32, i32
  }
  func.func @transform_11(%arg0: i32, %arg1: i32) -> (i32, i32, i32) {
    %c0_i32 = arith.constant 0 : i32
    %c0_i32_0 = arith.constant 0 : i32
    return %arg0, %arg1, %c0_i32 : i32, i32, i32
  }
}

</mosaic_0001>

<llo_original>
// kernel: tpu_custom_call.1
$region0: #{tpu_custom_call.1}
  #allocation0 [shape = 'u32[]', space=smem, size = 0x4, offset = 0x4, fixed_abs, tag = 'smem constant byte address 0x4 - core index']
  #allocation1 [shape = 'u32[72,128]{1,0:T(1,128)}', space=vmem, size = 0x9000, scoped, tag = 'internal scratch']
  #allocation2 [shape = 'bf16[8,32]{1,0:T(8,128)(2,1)}', space=vmem, size = 0x800, scoped, tag = 'scratch operand']
  %s0 = inlined_call_operand.hbm [shape: f32[2,8,32], index: 0, kind: input, shape index: {}]
  %s1 = inlined_call_operand.hbm [shape: f32[2,8,32], index: 1, kind: input, shape index: {}]
  %s2 = inlined_call_operand.hbm [shape: f32[2,8,32], index: 2, kind: input, shape index: {}]
  %s3 = inlined_call_operand.hbm [shape: bf16[32,32], index: 3, kind: input, shape index: {}]
  %s4 = inlined_call_operand.vmem [shape: f32[1,32], index: 4, kind: input, shape index: {}]
  %s5 = inlined_call_operand.hbm [shape: bf16[32,32], index: 5, kind: input, shape index: {}]
  %s6 = inlined_call_operand.vmem [shape: f32[1,32], index: 6, kind: input, shape index: {}]
  %s7 = inlined_call_operand.hbm [shape: bf16[32,32], index: 7, kind: input, shape index: {}]
  %s8 = inlined_call_operand.vmem [shape: f32[1,32], index: 8, kind: input, shape index: {}]
  %s9 = inlined_call_operand.hbm [shape: bf16[32,32], index: 9, kind: input, shape index: {}]
  %s10 = inlined_call_operand.vmem [shape: f32[1,32], index: 10, kind: input, shape index: {}]
  %s11 = inlined_call_operand.hbm [shape: f32[2,8,32], index: 11, kind: output, shape index: {}]
  %s12 = sld [smem:[#allocation0]]
  $region105: #{tpu_custom_call.1} parent=0
    _
  %s14 = ssub.s32 1, %s12
  %s15 = scalar_select 0, %s14, %s12
  $region1: #{tpu_custom_call.1} parent=0
    #allocation3 [shape = 'u8[8192]{0}', space=vmem, size = 0x2000, scoped, tag = 'input window, operand 0']
    #allocation4 [shape = 's32[2]{0}', space=sflag, size = 0x8, scoped, tag = 'scoped memory for tpu_custom_call.1']
    #allocation5 [shape = 's32[2]{0}', space=sflag, size = 0x8, scoped, tag = 'scoped memory for tpu_custom_call.1']
    #allocation6 [shape = 'u8[8192]{0}', space=vmem, size = 0x2000, scoped, tag = 'input window, operand 1']
    #allocation7 [shape = 's32[2]{0}', space=sflag, size = 0x8, scoped, tag = 'scoped memory for tpu_custom_call.1']
    #allocation8 [shape = 'u8[8192]{0}', space=vmem, size = 0x2000, scoped, tag = 'input window, operand 2']
    #allocation9 [shape = 'u8[8192]{0}', space=vmem, size = 0x2000, scoped, tag = 'input window, operand 3, single buffered']
    #allocation10 [shape = 's32[1]{0}', space=sflag, size = 0x4, scoped, tag = 'scoped memory for tpu_custom_call.1']
    #allocation11 [shape = 'u8[8192]{0}', space=vmem, size = 0x2000, scoped, tag = 'input window, operand 5, single buffered']
    #allocation12 [shape = 'u8[8192]{0}', space=vmem, size = 0x2000, scoped, tag = 'input window, operand 7, single buffered']
    #allocation13 [shape = 's32[1]{0}', space=sflag, size = 0x4, scoped, tag = 'scoped memory for tpu_custom_call.1']
    #allocation14 [shape = 'u8[8192]{0}', space=vmem, size = 0x2000, scoped, tag = 'input window, operand 9, single buffered']
    #allocation15 [shape = 'u8[8192]{0}', space=vmem, size = 0x2000, scoped, tag = 'output window, operand 0']
    %16 = vsyncpa [#allocation4], 0
    %s17 = scalar_lea.sflag [#allocation4], 1
    %18 = vsyncpa %s17, 0
    %19 = vsyncpa [#allocation7], 0
    %s20 = scalar_lea.sflag [#allocation7], 1
    %21 = vsyncpa %s20, 0
    %22 = vsyncpa [#allocation10], 0
    %23 = vsyncpa [#allocation13], 0
    %24 = vsyncpa [#allocation5], 0
    %s25 = scalar_lea.sflag [#allocation5], 1
    %26 = vsyncpa %s25, 0
    loop: start=0, step=1, limit=4
    $region2: #{tpu_custom_call.1} parent=1 // loop_pre_header
      _
    $region3: #{tpu_custom_call.1} parent=1 // loop_header
      %s28 = sphi 0, %s32
      %p29 = scmp.ge.s32.totalorder %s28, 4
      %s35 = sphi 0, %s47
      %s36 = sphi 0, %s43
      %s37 = sphi 0, %s35
      %s38 = sphi 0, %s36
      %s39 = sphi 0, %s37
      %s40 = sphi 0, %s38
      %s52 = sphi 0, %s54
      %s55 = sphi 0, %s52
      %s56 = sphi 0, %s55
      %s72 = sphi 0, %s56
      %s78 = sphi 0, %s80
      %s81 = sphi 0, %s78
      %s82 = sphi 0, %s81
      %s98 = sphi 0, %s82
      %s104 = sphi 0, %s106
      %s107 = sphi 0, %s104
      %s108 = sphi 0, %s107
      %s124 = sphi 0, %s108
      %s128 = sphi 0, %s128
      %s130 = sphi 0, %s128
      %s131 = sphi 0, %s130
      %s145 = sphi 0, %s131
      %s149 = sphi 0, %s149
      %s151 = sphi 0, %s149
      %s152 = sphi 0, %s151
      %s166 = sphi 0, %s152
      %s170 = sphi 0, %s170
      %s172 = sphi 0, %s170
      %s173 = sphi 0, %s172
      %s187 = sphi 0, %s173
      %s191 = sphi 0, %s191
      %s193 = sphi 0, %s191
      %s194 = sphi 0, %s193
      %s208 = sphi 0, %s194
      %s212 = sphi 0, %s212
      %s214 = sphi 0, %s212
      %s215 = sphi 0, %s214
      %s229 = sphi 0, %s215
      %s233 = sphi 0, %s233
      %s235 = sphi 0, %s233
      %s236 = sphi 0, %s235
      %s250 = sphi 0, %s236
      %s254 = sphi 0, %s254
      %s256 = sphi 0, %s254
      %s257 = sphi 0, %s256
      %s271 = sphi 0, %s257
      %s275 = sphi 0, %s275
      %s277 = sphi 0, %s275
      %s278 = sphi 0, %s277
      %s292 = sphi 0, %s278
      %s300 = sphi 0, %s302
      %s303 = sphi 0, %s300
      %s304 = sphi 0, %s303
      %s320 = sphi 0, %s304
    $region4: #{tpu_custom_call.1} parent=1 // loop_header_branch
      %31 = sbr.rel (%p29) target = $region8
    $region5: #{tpu_custom_call.1} parent=1 // loop_body
      %s33 = ssub.s32 %s28, 1
      %s34 = ssub.s32 %s28, 2
      %s41 = sadd.s32 1, %s36
      %p42 = scmp.ge.s32.totalorder %s41, 1
      %s43 = scalar_select %p42, 0, %s41
      %s44 = sadd.s32 1, %s35
      %s45 = scalar_select %p42, %s44, %s35
      %p46 = scmp.ge.s32.totalorder %s45, 2
      %s47 = scalar_select %p46, 0, %s45
      %s48 = ssub.s32 %s35, %s47
      %s49 = ssub.s32 %s36, %s43
      %s50 = sor.u32 %s48, %s49
      %p51 = scmp.eq.s32.totalorder %s50, 0
      %s53 = sadd.s32 %s52, 1
      %s54 = scalar_select %p51, %s52, %s53
      %p57 = pneg %p51
      %p58 = scmp.eq.s32.totalorder %s28, 1
      %p59 = por %p57, %p58
      %p60 = scmp.ne.s32.totalorder %s52, %s55
      %p61 = scmp.eq.s32.totalorder %s28, 0
      %p62 = por %p60, %p61
      %p63 = scmp.ne.s32.totalorder %s52, %s55
      %p64 = scmp.eq.s32.totalorder %s33, 1
      %p65 = por %p63, %p64
      %p66 = scmp.ne.s32.totalorder %s55, %s56
      %p67 = scmp.eq.s32.totalorder %s33, 0
      %p68 = por %p66, %p67
      %p69 = scmp.ne.s32.totalorder %s55, %s56
      %p70 = scmp.eq.s32.totalorder %s34, 1
      %p71 = por %p69, %p70
      %p73 = scmp.ne.s32.totalorder %s56, %s72
      %p74 = scmp.eq.s32.totalorder %s34, 0
      %p75 = por %p73, %p74
      %s76 = ssub.s32 %s35, %s47
      %p77 = scmp.eq.s32.totalorder %s76, 0
      %s79 = sadd.s32 %s78, 1
      %s80 = scalar_select %p77, %s78, %s79
      %p83 = pneg %p77
      %p84 = scmp.eq.s32.totalorder %s28, 1
      %p85 = por %p83, %p84
      %p86 = scmp.ne.s32.totalorder %s78, %s81
      %p87 = scmp.eq.s32.totalorder %s28, 0
      %p88 = por %p86, %p87
      %p89 = scmp.ne.s32.totalorder %s78, %s81
      %p90 = scmp.eq.s32.totalorder %s33, 1
      %p91 = por %p89, %p90
      %p92 = scmp.ne.s32.totalorder %s81, %s82
      %p93 = scmp.eq.s32.totalorder %s33, 0
      %p94 = por %p92, %p93
      %p95 = scmp.ne.s32.totalorder %s81, %s82
      %p96 = scmp.eq.s32.totalorder %s34, 1
      %p97 = por %p95, %p96
      %p99 = scmp.ne.s32.totalorder %s82, %s98
      %p100 = scmp.eq.s32.totalorder %s34, 0
      %p101 = por %p99, %p100
      %s102 = ssub.s32 %s35, %s47
      %p103 = scmp.eq.s32.totalorder %s102, 0
      %s105 = sadd.s32 %s104, 1
      %s106 = scalar_select %p103, %s104, %s105
      %p109 = pneg %p103
      %p110 = scmp.eq.s32.totalorder %s28, 1
      %p111 = por %p109, %p110
      %p112 = scmp.ne.s32.totalorder %s104, %s107
      %p113 = scmp.eq.s32.totalorder %s28, 0
      %p114 = por %p112, %p113
      %p115 = scmp.ne.s32.totalorder %s104, %s107
      %p116 = scmp.eq.s32.totalorder %s33, 1
      %p117 = por %p115, %p116
      %p118 = scmp.ne.s32.totalorder %s107, %s108
      %p119 = scmp.eq.s32.totalorder %s33, 0
      %p120 = por %p118, %p119
      %p121 = scmp.ne.s32.totalorder %s107, %s108
      %p122 = scmp.eq.s32.totalorder %s34, 1
      %p123 = por %p121, %p122
      %p125 = scmp.ne.s32.totalorder %s108, %s124
      %p126 = scmp.eq.s32.totalorder %s34, 0
      %p127 = por %p125, %p126
      %s129 = sadd.s32 %s128, 1
      %p132 = scmp.eq.s32.totalorder %s28, 1
      %p133 = scmp.ne.s32.totalorder %s128, %s130
      %p134 = scmp.eq.s32.totalorder %s28, 0
      %p135 = por %p133, %p134
      %p136 = scmp.ne.s32.totalorder %s128, %s130
      %p137 = scmp.eq.s32.totalorder %s33, 1
      %p138 = por %p136, %p137
      %p139 = scmp.ne.s32.totalorder %s130, %s131
      %p140 = scmp.eq.s32.totalorder %s33, 0
      %p141 = por %p139, %p140
      %p142 = scmp.ne.s32.totalorder %s130, %s131
      %p143 = scmp.eq.s32.totalorder %s34, 1
      %p144 = por %p142, %p143
      %p146 = scmp.ne.s32.totalorder %s131, %s145
      %p147 = scmp.eq.s32.totalorder %s34, 0
      %p148 = por %p146, %p147
      %s150 = sadd.s32 %s149, 1
      %p153 = scmp.eq.s32.totalorder %s28, 1
      %p154 = scmp.ne.s32.totalorder %s149, %s151
      %p155 = scmp.eq.s32.totalorder %s28, 0
      %p156 = por %p154, %p155
      %p157 = scmp.ne.s32.totalorder %s149, %s151
      %p158 = scmp.eq.s32.totalorder %s33, 1
      %p159 = por %p157, %p158
      %p160 = scmp.ne.s32.totalorder %s151, %s152
      %p161 = scmp.eq.s32.totalorder %s33, 0
      %p162 = por %p160, %p161
      %p163 = scmp.ne.s32.totalorder %s151, %s152
      %p164 = scmp.eq.s32.totalorder %s34, 1
      %p165 = por %p163, %p164
      %p167 = scmp.ne.s32.totalorder %s152, %s166
      %p168 = scmp.eq.s32.totalorder %s34, 0
      %p169 = por %p167, %p168
      %s171 = sadd.s32 %s170, 1
      %p174 = scmp.eq.s32.totalorder %s28, 1
      %p175 = scmp.ne.s32.totalorder %s170, %s172
      %p176 = scmp.eq.s32.totalorder %s28, 0
      %p177 = por %p175, %p176
      %p178 = scmp.ne.s32.totalorder %s170, %s172
      %p179 = scmp.eq.s32.totalorder %s33, 1
      %p180 = por %p178, %p179
      %p181 = scmp.ne.s32.totalorder %s172, %s173
      %p182 = scmp.eq.s32.totalorder %s33, 0
      %p183 = por %p181, %p182
      %p184 = scmp.ne.s32.totalorder %s172, %s173
      %p185 = scmp.eq.s32.totalorder %s34, 1
      %p186 = por %p184, %p185
      %p188 = scmp.ne.s32.totalorder %s173, %s187
      %p189 = scmp.eq.s32.totalorder %s34, 0
      %p190 = por %p188, %p189
      %s192 = sadd.s32 %s191, 1
      %p195 = scmp.eq.s32.totalorder %s28, 1
      %p196 = scmp.ne.s32.totalorder %s191, %s193
      %p197 = scmp.eq.s32.totalorder %s28, 0
      %p198 = por %p196, %p197
      %p199 = scmp.ne.s32.totalorder %s191, %s193
      %p200 = scmp.eq.s32.totalorder %s33, 1
      %p201 = por %p199, %p200
      %p202 = scmp.ne.s32.totalorder %s193, %s194
      %p203 = scmp.eq.s32.totalorder %s33, 0
      %p204 = por %p202, %p203
      %p205 = scmp.ne.s32.totalorder %s193, %s194
      %p206 = scmp.eq.s32.totalorder %s34, 1
      %p207 = por %p205, %p206
      %p209 = scmp.ne.s32.totalorder %s194, %s208
      %p210 = scmp.eq.s32.totalorder %s34, 0
      %p211 = por %p209, %p210
      %s213 = sadd.s32 %s212, 1
      %p216 = scmp.eq.s32.totalorder %s28, 1
      %p217 = scmp.ne.s32.totalorder %s212, %s214
      %p218 = scmp.eq.s32.totalorder %s28, 0
      %p219 = por %p217, %p218
      %p220 = scmp.ne.s32.totalorder %s212, %s214
      %p221 = scmp.eq.s32.totalorder %s33, 1
      %p222 = por %p220, %p221
      %p223 = scmp.ne.s32.totalorder %s214, %s215
      %p224 = scmp.eq.s32.totalorder %s33, 0
      %p225 = por %p223, %p224
      %p226 = scmp.ne.s32.totalorder %s214, %s215
      %p227 = scmp.eq.s32.totalorder %s34, 1
      %p228 = por %p226, %p227
      %p230 = scmp.ne.s32.totalorder %s215, %s229
      %p231 = scmp.eq.s32.totalorder %s34, 0
      %p232 = por %p230, %p231
      %s234 = sadd.s32 %s233, 1
      %p237 = scmp.eq.s32.totalorder %s28, 1
      %p238 = scmp.ne.s32.totalorder %s233, %s235
      %p239 = scmp.eq.s32.totalorder %s28, 0
      %p240 = por %p238, %p239
      %p241 = scmp.ne.s32.totalorder %s233, %s235
      %p242 = scmp.eq.s32.totalorder %s33, 1
      %p243 = por %p241, %p242
      %p244 = scmp.ne.s32.totalorder %s235, %s236
      %p245 = scmp.eq.s32.totalorder %s33, 0
      %p246 = por %p244, %p245
      %p247 = scmp.ne.s32.totalorder %s235, %s236
      %p248 = scmp.eq.s32.totalorder %s34, 1
      %p249 = por %p247, %p248
      %p251 = scmp.ne.s32.totalorder %s236, %s250
      %p252 = scmp.eq.s32.totalorder %s34, 0
      %p253 = por %p251, %p252
      %s255 = sadd.s32 %s254, 1
      %p258 = scmp.eq.s32.totalorder %s28, 1
      %p259 = scmp.ne.s32.totalorder %s254, %s256
      %p260 = scmp.eq.s32.totalorder %s28, 0
      %p261 = por %p259, %p260
      %p262 = scmp.ne.s32.totalorder %s254, %s256
      %p263 = scmp.eq.s32.totalorder %s33, 1
      %p264 = por %p262, %p263
      %p265 = scmp.ne.s32.totalorder %s256, %s257
      %p266 = scmp.eq.s32.totalorder %s33, 0
      %p267 = por %p265, %p266
      %p268 = scmp.ne.s32.totalorder %s256, %s257
      %p269 = scmp.eq.s32.totalorder %s34, 1
      %p270 = por %p268, %p269
      %p272 = scmp.ne.s32.totalorder %s257, %s271
      %p273 = scmp.eq.s32.totalorder %s34, 0
      %p274 = por %p272, %p273
      %s276 = sadd.s32 %s275, 1
      %p279 = scmp.eq.s32.totalorder %s28, 1
      %p280 = scmp.ne.s32.totalorder %s275, %s277
      %p281 = scmp.eq.s32.totalorder %s28, 0
      %p282 = por %p280, %p281
      %p283 = scmp.ne.s32.totalorder %s275, %s277
      %p284 = scmp.eq.s32.totalorder %s33, 1
      %p285 = por %p283, %p284
      %p286 = scmp.ne.s32.totalorder %s277, %s278
      %p287 = scmp.eq.s32.totalorder %s33, 0
      %p288 = por %p286, %p287
      %p289 = scmp.ne.s32.totalorder %s277, %s278
      %p290 = scmp.eq.s32.totalorder %s34, 1
      %p291 = por %p289, %p290
      %p293 = scmp.ne.s32.totalorder %s278, %s292
      %p294 = scmp.eq.s32.totalorder %s34, 0
      %p295 = por %p293, %p294
      %s296 = ssub.s32 %s35, %s47
      %s297 = ssub.s32 %s36, %s43
      %s298 = sor.u32 %s296, %s297
      %p299 = scmp.eq.s32.totalorder %s298, 0
      %s301 = sadd.s32 %s300, 1
      %s302 = scalar_select %p299, %s300, %s301
      %p305 = pneg %p299
      %p306 = scmp.eq.s32.totalorder %s28, 1
      %p307 = por %p305, %p306
      %p308 = scmp.ne.s32.totalorder %s300, %s303
      %p309 = scmp.eq.s32.totalorder %s28, 0
      %p310 = por %p308, %p309
      %p311 = scmp.ne.s32.totalorder %s300, %s303
      %p312 = scmp.eq.s32.totalorder %s33, 1
      %p313 = por %p311, %p312
      %p314 = scmp.ne.s32.totalorder %s303, %s304
      %p315 = scmp.eq.s32.totalorder %s33, 0
      %p316 = por %p314, %p315
      %p317 = scmp.ne.s32.totalorder %s303, %s304
      %p318 = scmp.eq.s32.totalorder %s34, 1
      %p319 = por %p317, %p318
      %p321 = scmp.ne.s32.totalorder %s304, %s320
      %p322 = scmp.eq.s32.totalorder %s34, 0
      %p323 = por %p321, %p322
      %p324 = scmp.le.s32.totalorder 1, %s28
      %p325 = scmp.lt.s32.totalorder %s28, 3
      %p326 = pnand %p324, %p325
      %p327 = pneg %p326
      // Predicated region
      $region9: #{tpu_custom_call.1} parent=5 // pred_check
        _
      $region10: #{tpu_custom_call.1} parent=5 // pred_check_branch
        %329 = sbr.rel (%p326) target = $region12
      $region11: #{tpu_custom_call.1} parent=5 // pred_region
        %s330 = ssub.s32 %s28, 1
        // Predicated region
        $region13: #{tpu_custom_call.1} parent=11 // pred_check
          %p331 = pneg %p141
        $region14: #{tpu_custom_call.1} parent=11 // pred_check_branch
          %333 = sbr.rel (%p331) target = $region16
        $region15: #{tpu_custom_call.1} parent=11 // pred_region
          %335 = vsyncadd [#allocation10], 0
          %s336 = sshll.u32 %s3, 4
          %s337 = int_to_ptr.hbm [resolvable:$true] %s336
          %s338 = sshll.u32 [#allocation9], 4
          %s339 = int_to_ptr.vmem [resolvable:$true] %s338
          %344 = dma.hbm_to_vmem [thread:$0]  %s337, 256, %s339, [#allocation10], 64, 64, 4
        $region16: #{tpu_custom_call.1} parent=11 // pred_fallthru
          _
        // Predicated region
        $region17: #{tpu_custom_call.1} parent=11 // pred_check
          %p345 = pneg %p162
        $region18: #{tpu_custom_call.1} parent=11 // pred_check_branch
          %347 = sbr.rel (%p345) target = $region20
        $region19: #{tpu_custom_call.1} parent=11 // pred_region
          _
        $region20: #{tpu_custom_call.1} parent=11 // pred_fallthru
          _
        // Predicated region
        $region21: #{tpu_custom_call.1} parent=11 // pred_check
          %p348 = pneg %p183
        $region22: #{tpu_custom_call.1} parent=11 // pred_check_branch
          %350 = sbr.rel (%p348) target = $region24
        $region23: #{tpu_custom_call.1} parent=11 // pred_region
          %352 = vsyncadd [#allocation10], 0
          %s353 = sshll.u32 %s5, 4
          %s354 = int_to_ptr.hbm [resolvable:$true] %s353
          %s355 = sshll.u32 [#allocation11], 4
          %s356 = int_to_ptr.vmem [resolvable:$true] %s355
          %361 = dma.hbm_to_vmem [thread:$0]  %s354, 256, %s356, [#allocation10], 64, 64, 4
        $region24: #{tpu_custom_call.1} parent=11 // pred_fallthru
          _
        // Predicated region
        $region25: #{tpu_custom_call.1} parent=11 // pred_check
          %p362 = pneg %p204
        $region26: #{tpu_custom_call.1} parent=11 // pred_check_branch
          %364 = sbr.rel (%p362) target = $region28
        $region27: #{tpu_custom_call.1} parent=11 // pred_region
          _
        $region28: #{tpu_custom_call.1} parent=11 // pred_fallthru
          _
        // Predicated region
        $region29: #{tpu_custom_call.1} parent=11 // pred_check
          %p365 = pneg %p225
        $region30: #{tpu_custom_call.1} parent=11 // pred_check_branch
          %367 = sbr.rel (%p365) target = $region32
        $region31: #{tpu_custom_call.1} parent=11 // pred_region
          %369 = vsyncadd [#allocation13], 0
          %s370 = sshll.u32 %s7, 4
          %s371 = int_to_ptr.hbm [resolvable:$true] %s370
          %s372 = sshll.u32 [#allocation12], 4
          %s373 = int_to_ptr.vmem [resolvable:$true] %s372
          %378 = dma.hbm_to_vmem [thread:$0]  %s371, 256, %s373, [#allocation13], 64, 64, 4
        $region32: #{tpu_custom_call.1} parent=11 // pred_fallthru
          _
        // Predicated region
        $region33: #{tpu_custom_call.1} parent=11 // pred_check
          %p379 = pneg %p246
        $region34: #{tpu_custom_call.1} parent=11 // pred_check_branch
          %381 = sbr.rel (%p379) target = $region36
        $region35: #{tpu_custom_call.1} parent=11 // pred_region
          _
        $region36: #{tpu_custom_call.1} parent=11 // pred_fallthru
          _
        // Predicated region
        $region37: #{tpu_custom_call.1} parent=11 // pred_check
          %p382 = pneg %p267
        $region38: #{tpu_custom_call.1} parent=11 // pred_check_branch
          %384 = sbr.rel (%p382) target = $region40
        $region39: #{tpu_custom_call.1} parent=11 // pred_region
          %386 = vsyncadd [#allocation13], 0
          %s387 = sshll.u32 %s9, 4
          %s388 = int_to_ptr.hbm [resolvable:$true] %s387
          %s389 = sshll.u32 [#allocation14], 4
          %s390 = int_to_ptr.vmem [resolvable:$true] %s389
          %395 = dma.hbm_to_vmem [thread:$0]  %s388, 256, %s390, [#allocation13], 64, 64, 4
        $region40: #{tpu_custom_call.1} parent=11 // pred_fallthru
          _
        // Predicated region
        $region41: #{tpu_custom_call.1} parent=11 // pred_check
          %p396 = pneg %p288
        $region42: #{tpu_custom_call.1} parent=11 // pred_check_branch
          %398 = sbr.rel (%p396) target = $region44
        $region43: #{tpu_custom_call.1} parent=11 // pred_region
          _
        $region44: #{tpu_custom_call.1} parent=11 // pred_fallthru
          _
      $region12: #{tpu_custom_call.1} parent=5 // pred_fallthru
        _
      %p399 = scmp.lt.s32.totalorder %s28, 2
      // Predicated region
      $region45: #{tpu_custom_call.1} parent=5 // pred_check
        %p400 = pneg %p399
      $region46: #{tpu_custom_call.1} parent=5 // pred_check_branch
        %402 = sbr.rel (%p400) target = $region48
      $region47: #{tpu_custom_call.1} parent=5 // pred_region
        // Predicated region
        $region49: #{tpu_custom_call.1} parent=47 // pred_check
          %p403 = pneg %p62
        $region50: #{tpu_custom_call.1} parent=47 // pred_check_branch
          %405 = sbr.rel (%p403) target = $region52
        $region51: #{tpu_custom_call.1} parent=47 // pred_region
          %s406 = sand.u32 %s52, 1
          %s407 = scalar_lea.sflag [#allocation4], %s406
          %s408 = sand.u32 %s52, 1
          %s409 = smul.addr %s408, 8
          %s410 = scalar_lea.vmem [#allocation3], %s409
          %412 = vsyncadd %s407, 0
          %s413 = sadd.s32 %s36, %s35
          %s414 = smul.addr %s413, 8
          %s415 = scalar_lea.hbm %s0, %s414
          %s417 = sshll.u32 %s415, 4
          %s418 = int_to_ptr.hbm [resolvable:$true] %s417
          %s419 = sshll.u32 %s410, 4
          %s420 = int_to_ptr.vmem [resolvable:$true] %s419
          %422 = dma.hbm_to_vmem [thread:$0]  %s418, 128, %s420, %s407
        $region52: #{tpu_custom_call.1} parent=47 // pred_fallthru
          _
        // Predicated region
        $region53: #{tpu_custom_call.1} parent=47 // pred_check
          %p423 = pneg %p88
        $region54: #{tpu_custom_call.1} parent=47 // pred_check_branch
          %425 = sbr.rel (%p423) target = $region56
        $region55: #{tpu_custom_call.1} parent=47 // pred_region
          %s426 = sand.u32 %s28, 1
          %s427 = scalar_lea.sflag [#allocation7], %s426
          %s428 = sand.u32 %s78, 1
          %s429 = smul.addr %s428, 8
          %s430 = scalar_lea.vmem [#allocation6], %s429
          %432 = vsyncadd %s427, 0
          %s433 = smul.addr %s35, 8
          %s434 = scalar_lea.hbm %s1, %s433
          %s436 = sshll.u32 %s434, 4
          %s437 = int_to_ptr.hbm [resolvable:$true] %s436
          %s438 = sshll.u32 %s430, 4
          %s439 = int_to_ptr.vmem [resolvable:$true] %s438
          %441 = dma.hbm_to_vmem [thread:$0]  %s437, 128, %s439, %s427
        $region56: #{tpu_custom_call.1} parent=47 // pred_fallthru
          _
        // Predicated region
        $region57: #{tpu_custom_call.1} parent=47 // pred_check
          %p442 = pneg %p114
        $region58: #{tpu_custom_call.1} parent=47 // pred_check_branch
          %444 = sbr.rel (%p442) target = $region60
        $region59: #{tpu_custom_call.1} parent=47 // pred_region
          %s445 = sand.u32 %s28, 1
          %s446 = scalar_lea.sflag [#allocation7], %s445
          %s447 = sand.u32 %s104, 1
          %s448 = smul.addr %s447, 8
          %s449 = scalar_lea.vmem [#allocation8], %s448
          %451 = vsyncadd %s446, 0
          %s452 = smul.addr %s35, 8
          %s453 = scalar_lea.hbm %s2, %s452
          %s455 = sshll.u32 %s453, 4
          %s456 = int_to_ptr.hbm [resolvable:$true] %s455
          %s457 = sshll.u32 %s449, 4
          %s458 = int_to_ptr.vmem [resolvable:$true] %s457
          %460 = dma.hbm_to_vmem [thread:$0]  %s456, 128, %s458, %s446
        $region60: #{tpu_custom_call.1} parent=47 // pred_fallthru
          _
      $region48: #{tpu_custom_call.1} parent=5 // pred_fallthru
        _
      %p461 = scmp.le.s32.totalorder 1, %s28
      %p462 = scmp.lt.s32.totalorder %s28, 3
      %p463 = pnand %p461, %p462
      %p464 = pneg %p463
      // Predicated region
      $region61: #{tpu_custom_call.1} parent=5 // pred_check
        _
      $region62: #{tpu_custom_call.1} parent=5 // pred_check_branch
        %466 = sbr.rel (%p463) target = $region64
      $region63: #{tpu_custom_call.1} parent=5 // pred_region
        %s467 = ssub.s32 %s28, 1
        %s468 = sand.u32 %s55, 1
        %s469 = scalar_lea.sflag [#allocation4], %s468
        %s470 = sand.u32 %s55, 1
        %s471 = smul.addr %s470, 8
        %s472 = scalar_lea.vmem [#allocation3], %s471
        // Predicated region
        $region65: #{tpu_custom_call.1} parent=63 // pred_check
          %p473 = pneg %p68
        $region66: #{tpu_custom_call.1} parent=63 // pred_check_branch
          %475 = sbr.rel (%p473) target = $region68
        $region67: #{tpu_custom_call.1} parent=63 // pred_region
          %477 = dma.done %s469, 128
        $region68: #{tpu_custom_call.1} parent=63 // pred_fallthru
          _
        %s478 = sand.u32 %s33, 1
        %s479 = scalar_lea.sflag [#allocation7], %s478
        %s480 = sand.u32 %s81, 1
        %s481 = smul.addr %s480, 8
        %s482 = scalar_lea.vmem [#allocation6], %s481
        // Predicated region
        $region69: #{tpu_custom_call.1} parent=63 // pred_check
          %p483 = pneg %p94
        $region70: #{tpu_custom_call.1} parent=63 // pred_check_branch
          %485 = sbr.rel (%p483) target = $region72
        $region71: #{tpu_custom_call.1} parent=63 // pred_region
          %487 = dma.done %s479, 128
        $region72: #{tpu_custom_call.1} parent=63 // pred_fallthru
          _
        %s488 = sand.u32 %s33, 1
        %s489 = scalar_lea.sflag [#allocation7], %s488
        %s490 = sand.u32 %s107, 1
        %s491 = smul.addr %s490, 8
        %s492 = scalar_lea.vmem [#allocation8], %s491
        // Predicated region
        $region73: #{tpu_custom_call.1} parent=63 // pred_check
          %p493 = pneg %p120
        $region74: #{tpu_custom_call.1} parent=63 // pred_check_branch
          %495 = sbr.rel (%p493) target = $region76
        $region75: #{tpu_custom_call.1} parent=63 // pred_region
          %497 = dma.done %s489, 128
        $region76: #{tpu_custom_call.1} parent=63 // pred_fallthru
          _
        // Predicated region
        $region77: #{tpu_custom_call.1} parent=63 // pred_check
          %p498 = pneg %p141
        $region78: #{tpu_custom_call.1} parent=63 // pred_check_branch
          %500 = sbr.rel (%p498) target = $region80
        $region79: #{tpu_custom_call.1} parent=63 // pred_region
          %502 = dma.done [#allocation10], 256
        $region80: #{tpu_custom_call.1} parent=63 // pred_fallthru
          _
        // Predicated region
        $region81: #{tpu_custom_call.1} parent=63 // pred_check
          %p503 = pneg %p183
        $region82: #{tpu_custom_call.1} parent=63 // pred_check_branch
          %505 = sbr.rel (%p503) target = $region84
        $region83: #{tpu_custom_call.1} parent=63 // pred_region
          %507 = dma.done [#allocation10], 256
        $region84: #{tpu_custom_call.1} parent=63 // pred_fallthru
          _
        // Predicated region
        $region85: #{tpu_custom_call.1} parent=63 // pred_check
          %p508 = pneg %p225
        $region86: #{tpu_custom_call.1} parent=63 // pred_check_branch
          %510 = sbr.rel (%p508) target = $region88
        $region87: #{tpu_custom_call.1} parent=63 // pred_region
          %512 = dma.done [#allocation13], 256
        $region88: #{tpu_custom_call.1} parent=63 // pred_fallthru
          _
        // Predicated region
        $region89: #{tpu_custom_call.1} parent=63 // pred_check
          %p513 = pneg %p267
        $region90: #{tpu_custom_call.1} parent=63 // pred_check_branch
          %515 = sbr.rel (%p513) target = $region92
        $region91: #{tpu_custom_call.1} parent=63 // pred_region
          %517 = dma.done [#allocation13], 256
        $region92: #{tpu_custom_call.1} parent=63 // pred_fallthru
          _
        %s518 = sand.u32 %s55, 1
        %s519 = scalar_lea.sflag [#allocation4], %s518
        %s520 = sand.u32 %s55, 1
        %s521 = smul.addr %s520, 8
        %s522 = scalar_lea.vmem [#allocation3], %s521
        %p523 = pneg %p68
        %p524 = pneg %p65
        %s525 = sand.u32 %s33, 1
        %s526 = scalar_lea.sflag [#allocation7], %s525
        %s527 = sand.u32 %s81, 1
        %s528 = smul.addr %s527, 8
        %s529 = scalar_lea.vmem [#allocation6], %s528
        %p530 = pneg %p94
        %p531 = pneg %p91
        %s532 = sand.u32 %s33, 1
        %s533 = scalar_lea.sflag [#allocation7], %s532
        %s534 = sand.u32 %s107, 1
        %s535 = smul.addr %s534, 8
        %s536 = scalar_lea.vmem [#allocation8], %s535
        %p537 = pneg %p120
        %p538 = pneg %p117
        %p539 = pneg %p141
        %p540 = pneg %p138
        %p541 = pneg %p162
        %p542 = pneg %p159
        %p543 = pneg %p183
        %p544 = pneg %p180
        %p545 = pneg %p204
        %p546 = pneg %p201
        %p547 = pneg %p225
        %p548 = pneg %p222
        %p549 = pneg %p246
        %p550 = pneg %p243
        %p551 = pneg %p267
        %p552 = pneg %p264
        %p553 = pneg %p288
        %p554 = pneg %p285
        %p555 = pneg %p316
        %p556 = pneg %p313
        %s557 = sand.u32 %s303, 1
        %s558 = scalar_lea.sflag [#allocation5], %s557
        %s559 = sand.u32 %s303, 1
        %s560 = smul.addr %s559, 8
        %s561 = scalar_lea.vmem [#allocation15], %s560
        %v563 = vld [vmem:[%s472] sm:$0xff]
        %v564 = vpack.c.bf16 %v563, %v563
        %v565 = vld [vmem:[%s482] sm:$0xff]
        %v566 = vpack.c.bf16 %v565, %v565
        %v567 = vld [vmem:[%s492] sm:$0xff]
        %v568 = vpack.c.bf16 %v567, %v567
        %v569 = vld [vmem:[#allocation9] sm:$0xf]
        %v570 = vld [vmem:[#allocation9 + $0x4] sm:$0xf]
        %v571 = vld [vmem:[#allocation9 + $0x8] sm:$0xf]
        %v572 = vld [vmem:[#allocation9 + $0xc] sm:$0xf]
        %v573 = vld [vmem:[%s4] sm:$0x1]
        %v575 = vperm.slane %v573, 0
        %v581 = vunpack.c.l.b16 %v569
        %v582 = vunpack.c.l.b16 %v570
        %v583 = vunpack.c.l.b16 %v571
        %v584 = vunpack.c.l.b16 %v572
        %v585 = vpack.c.b16 %v582, %v581
        %v586 = vpack.c.b16 %v584, %v583
        %vm589 = vcmask 261120
        %v591 = vsel %vm589, %v564, 0
        %593 = vmatpush.bf16.msra.mxu0 0
        %594 = vmatpush.bf16.msra.mxu0 0
        %595 = vmatpush.bf16.msra.mxu0 0
        %596 = vmatpush.bf16.msra.mxu0 0
        %597 = vmatpush.bf16.msra.mxu0 0
        %598 = vmatpush.bf16.msra.mxu0 0
        %599 = vmatpush.bf16.msra.mxu0 %v586
        %600 = vmatpush.bf16.msra.mxu0 %v585
        %601 = vmatmul.bf16.gmra.mxu0 %v591
        %v602 = vpop.f32.mrf.mxu0
        %v603 = vadd.f32 %v575, %v602
        %v604 = vpop.f32.mrf.mxu0
        %605 = vdwg.mxu0
        %v606 = vpack.c.bf16 %v603, %v603
        %v607 = vld [vmem:[#allocation11] sm:$0xf]
        %v608 = vld [vmem:[#allocation11 + $0x4] sm:$0xf]
        %v609 = vld [vmem:[#allocation11 + $0x8] sm:$0xf]
        %v610 = vld [vmem:[#allocation11 + $0xc] sm:$0xf]
        %v611 = vld [vmem:[%s6] sm:$0x1]
        %v613 = vperm.slane %v611, 0
        %v619 = vunpack.c.l.b16 %v607
        %v620 = vunpack.c.l.b16 %v608
        %v621 = vunpack.c.l.b16 %v609
        %v622 = vunpack.c.l.b16 %v610
        %v623 = vpack.c.b16 %v620, %v619
        %v624 = vpack.c.b16 %v622, %v621
        %v628 = vsel %vm589, %v566, 0
        %630 = vmatpush.bf16.msra.mxu0 0
        %631 = vmatpush.bf16.msra.mxu0 0
        %632 = vmatpush.bf16.msra.mxu0 0
        %633 = vmatpush.bf16.msra.mxu0 0
        %634 = vmatpush.bf16.msra.mxu0 0
        %635 = vmatpush.bf16.msra.mxu0 0
        %636 = vmatpush.bf16.msra.mxu0 %v624
        %637 = vmatpush.bf16.msra.mxu0 %v623
        %638 = vmatmul.bf16.gmra.mxu0 %v628
        %v639 = vpop.f32.mrf.mxu0
        %v640 = vadd.f32 %v613, %v639
        %v641 = vpop.f32.mrf.mxu0
        %642 = vdwg.mxu0
        %v643 = vpack.c.bf16 %v640, %v640
        %v644 = vld [vmem:[#allocation12] sm:$0xf]
        %v645 = vld [vmem:[#allocation12 + $0x4] sm:$0xf]
        %v646 = vld [vmem:[#allocation12 + $0x8] sm:$0xf]
        %v647 = vld [vmem:[#allocation12 + $0xc] sm:$0xf]
        %v648 = vld [vmem:[%s8] sm:$0x1]
        %v650 = vperm.slane %v648, 0
        %v656 = vunpack.c.l.b16 %v644
        %v657 = vunpack.c.l.b16 %v645
        %v658 = vunpack.c.l.b16 %v646
        %v659 = vunpack.c.l.b16 %v647
        %v660 = vpack.c.b16 %v657, %v656
        %v661 = vpack.c.b16 %v659, %v658
        %v665 = vsel %vm589, %v568, 0
        %667 = vmatpush.bf16.msra.mxu0 0
        %668 = vmatpush.bf16.msra.mxu0 0
        %669 = vmatpush.bf16.msra.mxu0 0
        %670 = vmatpush.bf16.msra.mxu0 0
        %671 = vmatpush.bf16.msra.mxu0 0
        %672 = vmatpush.bf16.msra.mxu0 0
        %673 = vmatpush.bf16.msra.mxu0 %v661
        %674 = vmatpush.bf16.msra.mxu0 %v660
        %675 = vmatmul.bf16.gmra.mxu0 %v665
        %v676 = vpop.f32.mrf.mxu0
        %v677 = vadd.f32 %v650, %v676
        %v678 = vpop.f32.mrf.mxu0
        %679 = vdwg.mxu0
        %v680 = vpack.c.bf16 %v677, %v677
        %vm681 = vcmask 130048
        %v683 = vsel %vm681, %v606, 0
        %v686 = vsel %vm681, %v643, 0
        %688 = vmatpush.bf16.xpose.msra.mxu0 0
        %689 = vmatpush.bf16.xpose.msra.mxu0 0
        %690 = vmatpush.bf16.xpose.msra.mxu0 0
        %691 = vmatpush.bf16.xpose.msra.mxu0 0
        %692 = vmatpush.bf16.xpose.msra.mxu0 0
        %693 = vmatpush.bf16.xpose.msra.mxu0 0
        %694 = vmatpush.bf16.xpose.msra.mxu0 0
        %695 = vmatpush.bf16.xpose.msra.mxu0 %v686
        %696 = vmatmul.bf16.gmra.mxu0 %v683
        %v697 = vpop.f32.mrf.mxu0
        %v698 = vadd.f32 0.0, %v697
        %v699 = vpop.f32.mrf.mxu0
        %700 = vdwg.mxu0
        %vm701 = vcmask 64512
        %v702 = vsel %vm701, %v698, -inf
        %703 = vmax.xlane.f32.xlu0 %v702
        %v704 = vpop.xlane.xlu0 %703
        %v705 = vsub.f32 %v698, %v704
        %v706 = vmul.f32 %v705, 1.442695
        %v707 = vpow.pop %v706
        %v708 = vsel %vm701, %v707, 0.0
        %709 = vadd.xlane.f32.xlu0 %v708
        %v710 = vpop.xlane.xlu0 %709
        %v711 = vrcp.pop %v710
        %v712 = vmul.f32 %v710, %v711
        %v713 = vsub.f32 1.0, %v712
        %v714 = vmul.f32 %v711, %v713
        %v715 = vadd.f32 %v711, %v714
        %vm716 = vweird.f32 %v710
        %vm717 = vweird.f32 %v711
        %vm718 = vmor %vm716, %vm717
        %v719 = vsel %vm718, %v711, %v715
        %v720 = vand.u32 2147483647, %v710
        %vm721 = vcmp.eq.f32.partialorder %v720, 8.507059e+37
        %v722 = vand.u32 %v710, 2147483648
        %v723 = vor.u32 1.1754944e-38, %v722
        %v724 = vsel %vm721, %v723, %v719
        %v725 = vpack.c.bf16 %v707, %v707
        %v727 = vsel %vm701, %v725, 0
        %vm729 = vcmask 1043456
        %v731 = vsel %vm729, %v680, 0
        %733 = vmatpush.bf16.msra.mxu0 0
        %734 = vmatpush.bf16.msra.mxu0 0
        %735 = vmatpush.bf16.msra.mxu0 0
        %736 = vmatpush.bf16.msra.mxu0 0
        %737 = vmatpush.bf16.msra.mxu0 0
        %738 = vmatpush.bf16.msra.mxu0 0
        %739 = vmatpush.bf16.msra.mxu0 0
        %740 = vmatpush.bf16.msra.mxu0 %v731
        %741 = vmatmul.bf16.gmra.mxu0 %v727
        %v742 = vpop.f32.mrf.mxu0
        %v743 = vadd.f32 0.0, %v742
        %v744 = vpop.f32.mrf.mxu0
        %745 = vdwg.mxu0
        %v746 = vmul.f32 %v743, %v724
        %v747 = vpack.c.bf16 %v746, %v746
        %vm748 = vcmask 125952
        %749 = vst.msk [vmem:[#allocation2] sm:$0xf] %vm748, %v747
        %v751 = vunpack.c.l.b16 %v606
        %v752 = vpack.c.b16 %v751, %v751
        %753 = vrot.lane.b32.xlu0 %v752, 112
        %v754 = vpop.permute.xlu0 %753
        %v756 = vunpack.c.l.b16 %v643
        %v757 = vpack.c.b16 %v756, %v756
        %758 = vrot.lane.b32.xlu0 %v757, 112
        %v759 = vpop.permute.xlu0 %758
        %v761 = vsel %vm681, %v754, 0
        %v764 = vsel %vm681, %v759, 0
        %766 = vmatpush.bf16.xpose.msra.mxu0 0
        %767 = vmatpush.bf16.xpose.msra.mxu0 0
        %768 = vmatpush.bf16.xpose.msra.mxu0 0
        %769 = vmatpush.bf16.xpose.msra.mxu0 0
        %770 = vmatpush.bf16.xpose.msra.mxu0 0
        %771 = vmatpush.bf16.xpose.msra.mxu0 0
        %772 = vmatpush.bf16.xpose.msra.mxu0 0
        %773 = vmatpush.bf16.xpose.msra.mxu0 %v764
        %774 = vmatmul.bf16.gmra.mxu0 %v761
        %v775 = vpop.f32.mrf.mxu0
        %v776 = vadd.f32 0.0, %v775
        %v777 = vpop.f32.mrf.mxu0
        %778 = vdwg.mxu0
        %v779 = vsel %vm701, %v776, -inf
        %780 = vmax.xlane.f32.xlu0 %v779
        %v781 = vpop.xlane.xlu0 %780
        %v782 = vsub.f32 %v776, %v781
        %v783 = vmul.f32 %v782, 1.442695
        %v784 = vpow.pop %v783
        %v785 = vsel %vm701, %v784, 0.0
        %786 = vadd.xlane.f32.xlu0 %v785
        %v787 = vpop.xlane.xlu0 %786
        %v788 = vrcp.pop %v787
        %v789 = vmul.f32 %v787, %v788
        %v790 = vsub.f32 1.0, %v789
        %v791 = vmul.f32 %v788, %v790
        %v792 = vadd.f32 %v788, %v791
        %vm793 = vweird.f32 %v787
        %vm794 = vweird.f32 %v788
        %vm795 = vmor %vm793, %vm794
        %v796 = vsel %vm795, %v788, %v792
        %v797 = vand.u32 2147483647, %v787
        %vm798 = vcmp.eq.f32.partialorder %v797, 8.507059e+37
        %v799 = vand.u32 %v787, 2147483648
        %v800 = vor.u32 1.1754944e-38, %v799
        %v801 = vsel %vm798, %v800, %v796
        %v802 = vpack.c.bf16 %v784, %v784
        %v804 = vunpack.c.l.b16 %v680
        %v805 = vpack.c.b16 %v804, %v804
        %806 = vrot.lane.b32.xlu0 %v805, 112
        %v807 = vpop.permute.xlu0 %806
        %v809 = vsel %vm701, %v802, 0
        %v812 = vsel %vm729, %v807, 0
        %814 = vmatpush.bf16.msra.mxu0 0
        %815 = vmatpush.bf16.msra.mxu0 0
        %816 = vmatpush.bf16.msra.mxu0 0
        %817 = vmatpush.bf16.msra.mxu0 0
        %818 = vmatpush.bf16.msra.mxu0 0
        %819 = vmatpush.bf16.msra.mxu0 0
        %820 = vmatpush.bf16.msra.mxu0 0
        %821 = vmatpush.bf16.msra.mxu0 %v812
        %822 = vmatmul.bf16.gmra.mxu0 %v809
        %v823 = vpop.f32.mrf.mxu0
        %v824 = vadd.f32 0.0, %v823
        %v825 = vpop.f32.mrf.mxu0
        %826 = vdwg.mxu0
        %v827 = vmul.f32 %v824, %v801
        %v828 = vpack.c.bf16 %v827, %v827
        %830 = vrot.lane.b32.xlu0 %v828, 16
        %v831 = vpop.permute.xlu0 %830
        %vm833 = vcmask 257152
        %834 = vst.msk [vmem:[#allocation2] sm:$0xf] %vm833, %v831
        %v835 = vld [vmem:[#allocation2] sm:$0xf]
        %v836 = vld [vmem:[#allocation14] sm:$0xf]
        %v837 = vld [vmem:[#allocation14 + $0x4] sm:$0xf]
        %v838 = vld [vmem:[#allocation14 + $0x8] sm:$0xf]
        %v839 = vld [vmem:[#allocation14 + $0xc] sm:$0xf]
        %v840 = vld [vmem:[%s10] sm:$0x1]
        %v842 = vperm.slane %v840, 0
        %v848 = vunpack.c.l.b16 %v836
        %v849 = vunpack.c.l.b16 %v837
        %v850 = vunpack.c.l.b16 %v838
        %v851 = vunpack.c.l.b16 %v839
        %v852 = vpack.c.b16 %v849, %v848
        %v853 = vpack.c.b16 %v851, %v850
        %v857 = vsel %vm589, %v835, 0
        %859 = vmatpush.bf16.msra.mxu0 0
        %860 = vmatpush.bf16.msra.mxu0 0
        %861 = vmatpush.bf16.msra.mxu0 0
        %862 = vmatpush.bf16.msra.mxu0 0
        %863 = vmatpush.bf16.msra.mxu0 0
        %864 = vmatpush.bf16.msra.mxu0 0
        %865 = vmatpush.bf16.msra.mxu0 %v853
        %866 = vmatpush.bf16.msra.mxu0 %v852
        %867 = vmatmul.bf16.gmra.mxu0 %v857
        %v868 = vpop.f32.mrf.mxu0
        %v869 = vadd.f32 %v842, %v868
        %v870 = vpop.f32.mrf.mxu0
        %871 = vdwg.mxu0
        %872 = vst.msk [vmem:[%s561] sm:$0xff] %vm589, %v869
        %s873 = sand.u32 %s303, 1
        %s874 = scalar_lea.sflag [#allocation5], %s873
        %s875 = sand.u32 %s303, 1
        %s876 = smul.addr %s875, 8
        %s877 = scalar_lea.vmem [#allocation15], %s876
        // Predicated region
        $region93: #{tpu_custom_call.1} parent=63 // pred_check
          %p878 = pneg %p313
        $region94: #{tpu_custom_call.1} parent=63 // pred_check_branch
          %880 = sbr.rel (%p878) target = $region96
        $region95: #{tpu_custom_call.1} parent=63 // pred_region
          %882 = vsyncadd %s874, 0
          %s883 = sadd.s32 %s38, %s37
          %s884 = smul.addr %s883, 8
          %s885 = scalar_lea.hbm %s11, %s884
          %s887 = sshll.u32 %s877, 4
          %s888 = int_to_ptr.vmem [resolvable:$true] %s887
          %s889 = sshll.u32 %s885, 4
          %s890 = int_to_ptr.hbm [resolvable:$true] %s889
          %892 = dma.vmem_to_hbm [thread:$0]  %s888, 128, %s890, %s874
        $region96: #{tpu_custom_call.1} parent=63 // pred_fallthru
          _
      $region64: #{tpu_custom_call.1} parent=5 // pred_fallthru
        _
      %p893 = scmp.le.s32.totalorder 2, %s28
      // Predicated region
      $region97: #{tpu_custom_call.1} parent=5 // pred_check
        %p894 = pneg %p893
      $region98: #{tpu_custom_call.1} parent=5 // pred_check_branch
        %896 = sbr.rel (%p894) target = $region100
      $region99: #{tpu_custom_call.1} parent=5 // pred_region
        %s897 = ssub.s32 %s28, 2
        // Predicated region
        $region101: #{tpu_custom_call.1} parent=99 // pred_check
          %p898 = pneg %p319
        $region102: #{tpu_custom_call.1} parent=99 // pred_check_branch
          %900 = sbr.rel (%p898) target = $region104
        $region103: #{tpu_custom_call.1} parent=99 // pred_region
          %s901 = sand.u32 %s304, 1
          %s902 = scalar_lea.sflag [#allocation5], %s901
          %s903 = sand.u32 %s304, 1
          %s904 = smul.addr %s903, 8
          %s905 = scalar_lea.vmem [#allocation15], %s904
          %907 = dma.done %s902, 128
        $region104: #{tpu_custom_call.1} parent=99 // pred_fallthru
          _
      $region100: #{tpu_custom_call.1} parent=5 // pred_fallthru
        _
    $region6: #{tpu_custom_call.1} parent=1 // loop_footer
      %s32 = sadd.s32 1, %s28
    $region7: #{tpu_custom_call.1} parent=1 // loop_footer_branch
      %27 = sbr.rel target = $region3
    $region8: #{tpu_custom_call.1} parent=1 // loop_exit
      _
    %908 = vsyncpa [#allocation4], 1
    %s909 = scalar_lea.sflag [#allocation4], 1
    %910 = vsyncpa %s909, 1
    %911 = vsyncpa [#allocation7], 1
    %s912 = scalar_lea.sflag [#allocation7], 1
    %913 = vsyncpa %s912, 1
    %914 = vsyncpa [#allocation10], 1
    %915 = vsyncpa [#allocation13], 1
    %916 = vsyncpa [#allocation5], 1
    %s917 = scalar_lea.sflag [#allocation5], 1
    %918 = vsyncpa %s917, 1

</llo_original>
